<compile_context>
chip_gen: v7x
topology: tpu7x:2x2x1
jax: 0.10.0
libtpu: 0.0.40
codegen_flags: <defaults>
</compile_context>

<pallas_src>
import math
from functools import partial

import jax
import jax.numpy as jnp
from jax.experimental import pallas as pl
from jax.experimental.pallas import tpu as pltpu

_LANE = 128  # lane width: batch tiles must be multiples of this or the full batch


def _attention_kernel(q_ref, inp_ref, w_ref, out_ref, *, use_null_token):
    # q_ref:   (Q, TB)     queries for this batch tile (batch on lanes)
    # inp_ref: (G, D, TB)  memory rows for this batch tile
    # w_ref:   (D, Q)      shared weight, pre-transposed
    # out_ref: (D, TB)     context output (lane-dense store)
    qT = q_ref[...]
    wT = w_ref[...]
    inp = inp_ref[...]  # no eager astype: promotion happens in the fused muls

    # s[d, b] = sum_q W[q, d] * query[b, q]   -- one MXU matmul, N = TB lanes,
    # fp32 contract precision so the f32 path matches the reference.
    s = jnp.dot(wT, qT,
                precision=jax.lax.Precision.HIGHEST,
                preferred_element_type=jnp.float32)                    # (D, TB)

    # scores[g, b] = sum_d s[d, b] * inp[b, g, d]   (VPU mul + cross-vreg adds)
    scores = jnp.sum(s[None, :, :] * inp, axis=1)                      # (G, TB) f32

    # Softmax over the group axis; the null token is folded in analytically:
    # its score is exactly 0 (zero value row), so it only adds exp(-m) to the
    # denominator and contributes nothing to the context.
    m = jnp.max(scores, axis=0, keepdims=True)                         # (1, TB)
    if use_null_token:
        m = jnp.maximum(m, 0.0)
    e = jnp.exp(scores - m)                                            # (G, TB)
    denom = jnp.sum(e, axis=0, keepdims=True)                          # (1, TB)
    if use_null_token:
        denom = denom + jnp.exp(-m)
    alphas = e / denom                         # exact divide (no approx recip)

    # ctx[d, b] = sum_g alphas[g, b] * inp[b, g, d]  (VPU mul + G-1 vreg adds)
    ctx = jnp.sum(alphas[:, None, :] * inp, axis=0)                    # (D, TB)
    out_ref[...] = ctx.astype(out_ref.dtype)


def _pick_batch_tile(B, max_tile):
    """Lane-dim batch tile: multiple of 128 (or the full batch); >=2 grid steps
    whenever B is large enough to split (keeps both v7x TensorCores busy)."""
    if B < 2 * _LANE:
        return B                                  # too small to split: one block
    half = (B // 2) // _LANE * _LANE              # largest 128-multiple <= B/2
    max_tile = max(_LANE, (max_tile // _LANE) * _LANE)
    return max(_LANE, min(max_tile, half))


def general_attention(inp, query, W, *, md_group_size, md_dim, query_dim,
                      use_null_token, batch_tile=1024):
    """Pallas GeneralAttention.forward (3-D input / 2-D query path).

    batch_tile is an upper bound on the per-grid-step batch tile.  Each batch
    row costs ~1 KiB of f32 VMEM (double-buffered inp tile + temporaries), so
    the default 1024 is safe on v5e/v6e/v7x under the 48 MiB vmem limit below;
    raise toward ~2048 (v5e/v6e) / ~4096 (v7x) for very large batches.
    """
    inp = inp.reshape(-1, md_group_size, md_dim)            # (B, G, D)
    query = query.reshape(-1, query_dim)                    # (B, Q)
    B, G, D = inp.shape
    Q = query_dim
    assert query.shape[0] == B

    # Batch-on-lanes layout (see module docstring / TODO about caller layout).
    qT = query.T                                            # (Q, B)
    inpT = jnp.transpose(inp, (1, 2, 0))                    # (G, D, B)
    wT = W.T                                                # (D, Q)

    tb = _pick_batch_tile(B, batch_tile)
    grid = (pl.cdiv(B, tb),)   # ragged tail handled by Pallas masked edge blocks

    itemsize = jnp.dtype(inp.dtype).itemsize
    cost = pl.CostEstimate(
        flops=int(B * (2 * Q * D + 4 * G * D)),
        transcendentals=int(B * (G + 1)),
        bytes_accessed=int(itemsize * (B * Q + B * G * D + Q * D + B * D)),
    )

    out = pl.pallas_call(
        partial(_attention_kernel, use_null_token=use_null_token),
        out_shape=jax.ShapeDtypeStruct((D, B), query.dtype),
        grid=grid,
        in_specs=[
            pl.BlockSpec((Q, tb), lambda b: (0, b)),
            pl.BlockSpec((G, D, tb), lambda b: (0, 0, b)),
            pl.BlockSpec((D, Q), lambda b: (0, 0)),
        ],
        out_specs=pl.BlockSpec((D, tb), lambda b: (0, b)),
        compiler_params=pltpu.CompilerParams(
            dimension_semantics=("parallel",),       # megacore / v7x 2-TC sharding
            vmem_limit_bytes=48 * 1024 * 1024,       # within v7x's 64 MiB physical
        ),
        cost_estimate=cost,
    )(qT, inpT, wT)

    # (D, B) -> (B, D); mimic torch's `.squeeze()` on the (B, 1, D) result.
    return jnp.squeeze(out.T)


def _reference(inp, query, W, *, md_group_size, md_dim, query_dim,
               use_null_token):
    """Pure-JAX reference mirroring the PyTorch forward (3-D input path),
    computed at HIGHEST matmul precision (true f32 on TPU)."""
    hp = jax.lax.Precision.HIGHEST
    query = query.reshape(-1, 1, query_dim)
    inp = inp.reshape(-1, md_group_size, md_dim)
    if use_null_token:
        zeros = jnp.zeros((inp.shape[0], 1, md_dim), dtype=inp.dtype)
        inp = jnp.concatenate([inp, zeros], axis=1)
    scores = jnp.matmul(query, W, precision=hp)
    scores = jnp.matmul(scores, jnp.swapaxes(inp, -1, -2), precision=hp)
    alphas = jax.nn.softmax(scores, axis=-1)
    context = jnp.matmul(alphas, inp, precision=hp)
    return jnp.squeeze(context)


if __name__ == "__main__":
    md_dim = 32
    query_dim = 32
    md_group_size = 8

    key = jax.random.PRNGKey(0)
    k_w, k_data = jax.random.split(key)

    # Deterministic kaiming_uniform_(a=sqrt(5)) init for W of shape (Q, D):
    # fan_in = md_dim, gain = sqrt(2/(1+a^2)), bound = gain*sqrt(3/fan_in).
    a = math.sqrt(5.0)
    gain = math.sqrt(2.0 / (1.0 + a * a))
    bound = gain * math.sqrt(3.0 / md_dim)
    W = jax.random.uniform(k_w, (query_dim, md_dim), jnp.float32,
                           minval=-bound, maxval=bound)

    data_keys = jax.random.split(k_data, 6)

    def run_check(batch, use_null_token, k_i, k_q):
        inp = jax.random.normal(k_i, (batch, md_group_size, md_dim), jnp.float32)
        query = jax.random.normal(k_q, (batch, query_dim), jnp.float32)
        kwargs = dict(md_group_size=md_group_size, md_dim=md_dim,
                      query_dim=query_dim, use_null_token=use_null_token)
        ctx = jax.block_until_ready(general_attention(inp, query, W, **kwargs))
        ref = _reference(inp, query, W, **kwargs)
        assert ctx.shape == ref.shape == (batch, md_dim), (ctx.shape, ref.shape)
        err = float(jnp.max(jnp.abs(ctx - ref)))
        assert jnp.allclose(ctx, ref, atol=5e-3, rtol=5e-3), f"max abs err {err}"

    # 1) tiny batch: single grid step covering the whole problem.
    run_check(4, True, data_keys[0], data_keys[1])
    # 2) B=256 -> tb=128, grid=(2,) parallel steps, no ragged tail.
    run_check(256, True, data_keys[2], data_keys[3])
    # 3) B=320 -> tb=128, grid=(3,), ragged final block (no wrapper pad),
    #    and the use_null_token=False branch.
    run_check(320, False, data_keys[4], data_keys[5])

    print("KERNEL_OK")
</pallas_src>

<mosaic_0001>
module attributes {stable_mosaic.version = 11 : i64} {
  func.func @_attention_kernel(%arg0: i32, %arg1: memref<32x4xf32, #tpu.memory_space<vmem>>, %arg2: memref<8x32x4xf32, #tpu.memory_space<vmem>>, %arg3: memref<32x32xf32, #tpu.memory_space<vmem>>, %arg4: memref<32x4xf32, #tpu.memory_space<vmem>>) attributes {dimension_semantics = [#tpu.dimension_semantics<parallel>], iteration_bounds = array<i64: 1>, scalar_prefetch = 0 : i64, scratch_operands = 0 : i64, tpu.core_type = #tpu.core_type<tc>, window_params = [{transform_indices = @transform_0, window_bounds = array<i64: 32, 4>}, {transform_indices = @transform_1, window_bounds = array<i64: 8, 32, 4>}, {pipeline_mode = #tpu.pipeline_mode<synchronous>, transform_indices = @transform_2, window_bounds = array<i64: 32, 32>}, {transform_indices = @transform_3, window_bounds = array<i64: 32, 4>}]} {
    %c0 = arith.constant 0 : index
    %c0_0 = arith.constant 0 : index
    %0 = vector.load %arg1[%c0, %c0_0] : memref<32x4xf32, #tpu.memory_space<vmem>>, vector<32x4xf32>
    %c0_1 = arith.constant 0 : index
    %c0_2 = arith.constant 0 : index
    %1 = vector.load %arg3[%c0_1, %c0_2] : memref<32x32xf32, #tpu.memory_space<vmem>>, vector<32x32xf32>
    %c0_3 = arith.constant 0 : index
    %c0_4 = arith.constant 0 : index
    %c0_5 = arith.constant 0 : index
    %2 = vector.load %arg2[%c0_3, %c0_4, %c0_5] : memref<8x32x4xf32, #tpu.memory_space<vmem>>, vector<8x32x4xf32>
    %cst = arith.constant dense<0.000000e+00> : vector<32x4xf32>
    %3 = tpu.matmul %1, %0, %cst {dimension_numbers = #tpu.dot_dimension_numbers<[1], [0], [0], [1], [0, 0, 1, 1], [], []>, precision = #tpu.contract_precision<fp32>} : vector<32x32xf32>, vector<32x4xf32>, vector<32x4xf32> -> vector<32x4xf32>
    %4 = vector.shape_cast %3 : vector<32x4xf32> to vector<1x32x4xf32>
    %5 = vector.broadcast %4 : vector<1x32x4xf32> to vector<8x32x4xf32>
    %6 = arith.mulf %5, %2 : vector<8x32x4xf32>
    %cst_6 = arith.constant dense<0.000000e+00> : vector<8x4xf32>
    %7 = vector.multi_reduction <add>, %6, %cst_6 [1] : vector<8x32x4xf32> to vector<8x4xf32>
    %cst_7 = arith.constant dense<0xFF800000> : vector<4xf32>
    %8 = vector.multi_reduction <maximumf>, %7, %cst_7 [0] : vector<8x4xf32> to vector<4xf32>
    %9 = vector.shape_cast %8 : vector<4xf32> to vector<1x4xf32>
    %cst_8 = arith.constant 0.000000e+00 : f32
    %10 = vector.broadcast %cst_8 : f32 to vector<1x4xf32>
    %11 = arith.maximumf %9, %10 : vector<1x4xf32>
    %12 = vector.broadcast %11 : vector<1x4xf32> to vector<8x4xf32>
    %13 = arith.subf %7, %12 : vector<8x4xf32>
    %14 = math.exp %13 : vector<8x4xf32>
    %cst_9 = arith.constant dense<0.000000e+00> : vector<4xf32>
    %15 = vector.multi_reduction <add>, %14, %cst_9 [0] : vector<8x4xf32> to vector<4xf32>
    %16 = vector.shape_cast %15 : vector<4xf32> to vector<1x4xf32>
    %cst_10 = arith.constant 0.000000e+00 : f32
    %17 = vector.broadcast %cst_10 : f32 to vector<1x4xf32>
    %18 = arith.subf %17, %11 : vector<1x4xf32>
    %19 = math.exp %18 : vector<1x4xf32>
    %20 = arith.addf %16, %19 : vector<1x4xf32>
    %21 = vector.broadcast %20 : vector<1x4xf32> to vector<8x4xf32>
    %22 = arith.divf %14, %21 : vector<8x4xf32>
    %23 = vector.shape_cast %22 : vector<8x4xf32> to vector<8x1x4xf32>
    %24 = vector.broadcast %23 : vector<8x1x4xf32> to vector<8x32x4xf32>
    %25 = arith.mulf %24, %2 : vector<8x32x4xf32>
    %cst_11 = arith.constant dense<0.000000e+00> : vector<32x4xf32>
    %26 = vector.multi_reduction <add>, %25, %cst_11 [0] : vector<8x32x4xf32> to vector<32x4xf32>
    %c0_12 = arith.constant 0 : index
    %c0_13 = arith.constant 0 : index
    %27 = vector.load %arg4[%c0_12, %c0_13] : memref<32x4xf32, #tpu.memory_space<vmem>>, vector<32x4xf32>
    tpu.vector_store %arg4[%c0_12, %c0_13], %26 {strides = array<i32>} : memref<32x4xf32, #tpu.memory_space<vmem>>, vector<32x4xf32>,
    return
  }
  func.func @transform_0(%arg0: i32) -> (i32, i32) {
    %c0_i32 = arith.constant 0 : i32
    %c0_i32_0 = arith.constant 0 : i32
    return %c0_i32, %arg0 : i32, i32
  }
  func.func @transform_1(%arg0: i32) -> (i32, i32, i32) {
    %c0_i32 = arith.constant 0 : i32
    %c0_i32_0 = arith.constant 0 : i32
    %c0_i32_1 = arith.constant 0 : i32
    return %c0_i32, %c0_i32_0, %arg0 : i32, i32, i32
  }
  func.func @transform_2(%arg0: i32) -> (i32, i32) {
    %c0_i32 = arith.constant 0 : i32
    %c0_i32_0 = arith.constant 0 : i32
    %c0_i32_1 = arith.constant 0 : i32
    return %c0_i32, %c0_i32_0 : i32, i32
  }
  func.func @transform_3(%arg0: i32) -> (i32, i32) {
    %c0_i32 = arith.constant 0 : i32
    %c0_i32_0 = arith.constant 0 : i32
    return %c0_i32, %arg0 : i32, i32
  }
}

</mosaic_0001>

<llo_original>
// kernel: tpu_custom_call.1
$region0: #{tpu_custom_call.1}
  #allocation0 [shape = 'u32[]', space=smem, size = 0x4, offset = 0x4, fixed_abs, tag = 'smem constant byte address 0x4 - core index']
  #allocation1 [shape = 'u32[144,128]{1,0:T(1,128)}', space=vmem, size = 0x12000, scoped, tag = 'internal scratch']
  %s0 = inlined_call_operand.vmem [shape: f32[32,4], index: 0, kind: input, shape index: {}]
  %s1 = inlined_call_operand.vmem [shape: f32[8,32,4], index: 1, kind: input, shape index: {}]
  %s2 = inlined_call_operand.vmem [shape: f32[32,32], index: 2, kind: input, shape index: {}]
  %s3 = inlined_call_operand.vmem [shape: f32[32,4], index: 3, kind: output, shape index: {}]
  %s4 = sld [smem:[#allocation0]]
  $region22: #{tpu_custom_call.1} parent=0
    _
  %s6 = ssub.s32 1, %s4
  %s7 = scalar_select 0, %s6, %s4
  // Predicated region
  $region2: #{tpu_custom_call.1} parent=0 // pred_check
    _
  $region3: #{tpu_custom_call.1} parent=0 // pred_check_branch
    %9 = sbr.rel (0) target = $region5
  $region4: #{tpu_custom_call.1} parent=0 // pred_region
    _
  $region5: #{tpu_custom_call.1} parent=0 // pred_fallthru
    _
  // Predicated region
  $region6: #{tpu_custom_call.1} parent=0 // pred_check
    _
  $region7: #{tpu_custom_call.1} parent=0 // pred_check_branch
    %11 = sbr.rel (0) target = $region9
  $region8: #{tpu_custom_call.1} parent=0 // pred_region
    _
  $region9: #{tpu_custom_call.1} parent=0 // pred_fallthru
    _
  // Predicated region
  $region10: #{tpu_custom_call.1} parent=0 // pred_check
    _
  $region11: #{tpu_custom_call.1} parent=0 // pred_check_branch
    %13 = sbr.rel (0) target = $region13
  $region12: #{tpu_custom_call.1} parent=0 // pred_region
    _
  $region13: #{tpu_custom_call.1} parent=0 // pred_fallthru
    _
  %v14 = vld [vmem:[%s0] sm:$0xff]
  %v15 = vld [vmem:[%s0 + $0x8] sm:$0xff]
  %v16 = vld [vmem:[%s0 + $0x10] sm:$0xff]
  %v17 = vld [vmem:[%s0 + $0x18] sm:$0xff]
  %v18 = vld [vmem:[%s2] sm:$0xff]
  %v19 = vld [vmem:[%s2 + $0x8] sm:$0xff]
  %v20 = vld [vmem:[%s2 + $0x10] sm:$0xff]
  %v21 = vld [vmem:[%s2 + $0x18] sm:$0xff]
  %v22 = vld [vmem:[%s1] sm:$0xff]
  %v23 = vld [vmem:[%s1 + $0x8] sm:$0xff]
  %v24 = vld [vmem:[%s1 + $0x10] sm:$0xff]
  %v25 = vld [vmem:[%s1 + $0x18] sm:$0xff]
  %v26 = vld [vmem:[%s1 + $0x20] sm:$0xff]
  %v27 = vld [vmem:[%s1 + $0x28] sm:$0xff]
  %v28 = vld [vmem:[%s1 + $0x30] sm:$0xff]
  %v29 = vld [vmem:[%s1 + $0x38] sm:$0xff]
  %v30 = vld [vmem:[%s1 + $0x40] sm:$0xff]
  %v31 = vld [vmem:[%s1 + $0x48] sm:$0xff]
  %v32 = vld [vmem:[%s1 + $0x50] sm:$0xff]
  %v33 = vld [vmem:[%s1 + $0x58] sm:$0xff]
  %v34 = vld [vmem:[%s1 + $0x60] sm:$0xff]
  %v35 = vld [vmem:[%s1 + $0x68] sm:$0xff]
  %v36 = vld [vmem:[%s1 + $0x70] sm:$0xff]
  %v37 = vld [vmem:[%s1 + $0x78] sm:$0xff]
  %v38 = vld [vmem:[%s1 + $0x80] sm:$0xff]
  %v39 = vld [vmem:[%s1 + $0x88] sm:$0xff]
  %v40 = vld [vmem:[%s1 + $0x90] sm:$0xff]
  %v41 = vld [vmem:[%s1 + $0x98] sm:$0xff]
  %v42 = vld [vmem:[%s1 + $0xa0] sm:$0xff]
  %v43 = vld [vmem:[%s1 + $0xa8] sm:$0xff]
  %v44 = vld [vmem:[%s1 + $0xb0] sm:$0xff]
  %v45 = vld [vmem:[%s1 + $0xb8] sm:$0xff]
  %v46 = vld [vmem:[%s1 + $0xc0] sm:$0xff]
  %v47 = vld [vmem:[%s1 + $0xc8] sm:$0xff]
  %v48 = vld [vmem:[%s1 + $0xd0] sm:$0xff]
  %v49 = vld [vmem:[%s1 + $0xd8] sm:$0xff]
  %v50 = vld [vmem:[%s1 + $0xe0] sm:$0xff]
  %v51 = vld [vmem:[%s1 + $0xe8] sm:$0xff]
  %v52 = vld [vmem:[%s1 + $0xf0] sm:$0xff]
  %v53 = vld [vmem:[%s1 + $0xf8] sm:$0xff]
  %vm54 = vcmask 261120
  %v56 = vsel %vm54, %v18, 0
  %v59 = vsel %vm54, %v19, 0
  %v62 = vsel %vm54, %v20, 0
  %v65 = vsel %vm54, %v21, 0
  %67 = vmatprep.subr.mxu0 0.0
  %v68 = vand.u32 %v14, 4294901760
  %69 = vmatpush1.msra.mxu0 %v68
  %70 = vmatprep.subr.mxu0 0.0
  %v71 = vand.u32 %v15, 4294901760
  %72 = vmatpush1.msra.mxu0 %v71
  %73 = vmatprep.subr.mxu0 0.0
  %v74 = vand.u32 %v16, 4294901760
  %75 = vmatpush1.msra.mxu0 %v74
  %76 = vmatprep.subr.mxu0 0.0
  %v77 = vand.u32 %v17, 4294901760
  %78 = vmatpush1.msra.mxu0 %v77
  %79 = vmatprep.subr.mxu0 0.0
  %80 = vmatpush1.msra.mxu0 0.0
  %81 = vmatprep.subr.mxu0 0.0
  %82 = vmatpush1.msra.mxu0 0.0
  %83 = vmatprep.subr.mxu0 0.0
  %84 = vmatpush1.msra.mxu0 0.0
  %85 = vmatprep.subr.mxu0 0.0
  %86 = vmatpush1.msra.mxu0 0.0
  %87 = vmatprep.subr.mxu0 0.0
  %88 = vmatpush1.msra.mxu0 0.0
  %89 = vmatprep.subr.mxu0 0.0
  %90 = vmatpush1.msra.mxu0 0.0
  %91 = vmatprep.subr.mxu0 0.0
  %92 = vmatpush1.msra.mxu0 0.0
  %93 = vmatprep.subr.mxu0 0.0
  %94 = vmatpush1.msra.mxu0 0.0
  %95 = vmatprep.subr.mxu0 0.0
  %96 = vmatpush1.msra.mxu0 0.0
  %97 = vmatprep.subr.mxu0 0.0
  %98 = vmatpush1.msra.mxu0 0.0
  %99 = vmatprep.subr.mxu0 0.0
  %100 = vmatpush1.msra.mxu0 0.0
  %101 = vmatprep.subr.mxu0 0.0
  %102 = vmatpush1.msra.mxu0 0.0
  %103 = vmatprep.subr.mxu0 0.0
  %104 = vmatpush1.msra.mxu0 0.0
  %105 = vmatprep.subr.mxu0 0.0
  %106 = vmatpush1.msra.mxu0 0.0
  %107 = vmatprep.subr.mxu0 0.0
  %108 = vmatpush1.msra.mxu0 0.0
  %109 = vmatprep.subr.mxu0 0.0
  %110 = vmatpush1.msra.mxu0 0.0
  %111 = vmatprep.subr.mxu0 0.0
  %112 = vmatpush1.msra.mxu0 0.0
  %113 = vmatprep.subr.mxu0 0.0
  %114 = vmatpush1.msra.mxu0 0.0
  %115 = vmatprep.subr.mxu0 0.0
  %116 = vmatpush1.msra.mxu0 0.0
  %117 = vmatprep.subr.mxu0 0.0
  %118 = vmatpush1.msra.mxu0 0.0
  %119 = vmatprep.subr.mxu0 0.0
  %120 = vmatpush1.msra.mxu0 0.0
  %121 = vmatprep.subr.mxu0 0.0
  %122 = vmatpush1.msra.mxu0 0.0
  %123 = vmatprep.subr.mxu0 0.0
  %124 = vmatpush1.msra.mxu0 0.0
  %125 = vmatprep.subr.mxu0 0.0
  %126 = vmatpush1.msra.mxu0 0.0
  %127 = vmatprep.subr.mxu0 0.0
  %128 = vmatpush1.msra.mxu0 0.0
  %129 = vmatprep.subr.mxu0 0.0
  %130 = vmatpush1.msra.mxu0 0.0
  %131 = vmatprep.subr.mxu0 0.0
  %132 = vmatpush1.msra.mxu0 0.0
  %133 = vmatprep.subr.mxu0 0.0
  %134 = vmatpush1.msra.mxu0 0.0
  %135 = vmatprep.mubr.f32.mxu0 0.0
  %v136 = vand.u32 %v56, 4294901760
  %v137 = vsub.f32 %v56, %v136
  %v138 = vand.u32 %v137, 4294901760
  %v139 = vsub.f32 %v137, %v138
  %v140 = vand.u32 %v139, 4294901760
  %141 = vmatmul.mubr.f32.gmra.mrb[0].mxu0 %v140
  %v142 = vpop.f32.mrb[0].mxu0
  %v143 = vadd.f32 0.0, %v142
  %v144 = vpop.f32.mrb[0].mxu0
  %145 = vmatprep.mubr.f32.mxu0 0.0
  %v146 = vand.u32 %v59, 4294901760
  %v147 = vsub.f32 %v59, %v146
  %v148 = vand.u32 %v147, 4294901760
  %v149 = vsub.f32 %v147, %v148
  %v150 = vand.u32 %v149, 4294901760
  %151 = vmatmul.mubr.f32.gmra.mrb[0].mxu0 %v150
  %v152 = vpop.f32.mrb[0].mxu0
  %v153 = vadd.f32 0.0, %v152
  %v154 = vpop.f32.mrb[0].mxu0
  %155 = vmatprep.mubr.f32.mxu0 0.0
  %v156 = vand.u32 %v62, 4294901760
  %v157 = vsub.f32 %v62, %v156
  %v158 = vand.u32 %v157, 4294901760
  %v159 = vsub.f32 %v157, %v158
  %v160 = vand.u32 %v159, 4294901760
  %161 = vmatmul.mubr.f32.gmra.mrb[0].mxu0 %v160
  %v162 = vpop.f32.mrb[0].mxu0
  %v163 = vadd.f32 0.0, %v162
  %v164 = vpop.f32.mrb[0].mxu0
  %165 = vmatprep.mubr.f32.mxu0 0.0
  %v166 = vand.u32 %v65, 4294901760
  %v167 = vsub.f32 %v65, %v166
  %v168 = vand.u32 %v167, 4294901760
  %v169 = vsub.f32 %v167, %v168
  %v170 = vand.u32 %v169, 4294901760
  %171 = vmatmul.mubr.f32.gmra.mrb[0].mxu0 %v170
  %v172 = vpop.f32.mrb[0].mxu0
  %v173 = vadd.f32 0.0, %v172
  %v174 = vpop.f32.mrb[0].mxu0
  %175 = vdwg.mxu0
  %176 = vmatprep.subr.mxu0 0.0
  %v177 = vand.u32 %v14, 4294901760
  %v178 = vsub.f32 %v14, %v177
  %v179 = vand.u32 %v178, 4294901760
  %v180 = vsub.f32 %v178, %v179
  %v181 = vand.u32 %v180, 4294901760
  %182 = vmatpush1.msra.mxu0 %v181
  %183 = vmatprep.subr.mxu0 0.0
  %v184 = vand.u32 %v15, 4294901760
  %v185 = vsub.f32 %v15, %v184
  %v186 = vand.u32 %v185, 4294901760
  %v187 = vsub.f32 %v185, %v186
  %v188 = vand.u32 %v187, 4294901760
  %189 = vmatpush1.msra.mxu0 %v188
  %190 = vmatprep.subr.mxu0 0.0
  %v191 = vand.u32 %v16, 4294901760
  %v192 = vsub.f32 %v16, %v191
  %v193 = vand.u32 %v192, 4294901760
  %v194 = vsub.f32 %v192, %v193
  %v195 = vand.u32 %v194, 4294901760
  %196 = vmatpush1.msra.mxu0 %v195
  %197 = vmatprep.subr.mxu0 0.0
  %v198 = vand.u32 %v17, 4294901760
  %v199 = vsub.f32 %v17, %v198
  %v200 = vand.u32 %v199, 4294901760
  %v201 = vsub.f32 %v199, %v200
  %v202 = vand.u32 %v201, 4294901760
  %203 = vmatpush1.msra.mxu0 %v202
  %204 = vmatprep.subr.mxu0 0.0
  %205 = vmatpush1.msra.mxu0 0.0
  %206 = vmatprep.subr.mxu0 0.0
  %207 = vmatpush1.msra.mxu0 0.0
  %208 = vmatprep.subr.mxu0 0.0
  %209 = vmatpush1.msra.mxu0 0.0
  %210 = vmatprep.subr.mxu0 0.0
  %211 = vmatpush1.msra.mxu0 0.0
  %212 = vmatprep.subr.mxu0 0.0
  %213 = vmatpush1.msra.mxu0 0.0
  %214 = vmatprep.subr.mxu0 0.0
  %215 = vmatpush1.msra.mxu0 0.0
  %216 = vmatprep.subr.mxu0 0.0
  %217 = vmatpush1.msra.mxu0 0.0
  %218 = vmatprep.subr.mxu0 0.0
  %219 = vmatpush1.msra.mxu0 0.0
  %220 = vmatprep.subr.mxu0 0.0
  %221 = vmatpush1.msra.mxu0 0.0
  %222 = vmatprep.subr.mxu0 0.0
  %223 = vmatpush1.msra.mxu0 0.0
  %224 = vmatprep.subr.mxu0 0.0
  %225 = vmatpush1.msra.mxu0 0.0
  %226 = vmatprep.subr.mxu0 0.0
  %227 = vmatpush1.msra.mxu0 0.0
  %228 = vmatprep.subr.mxu0 0.0
  %229 = vmatpush1.msra.mxu0 0.0
  %230 = vmatprep.subr.mxu0 0.0
  %231 = vmatpush1.msra.mxu0 0.0
  %232 = vmatprep.subr.mxu0 0.0
  %233 = vmatpush1.msra.mxu0 0.0
  %234 = vmatprep.subr.mxu0 0.0
  %235 = vmatpush1.msra.mxu0 0.0
  %236 = vmatprep.subr.mxu0 0.0
  %237 = vmatpush1.msra.mxu0 0.0
  %238 = vmatprep.subr.mxu0 0.0
  %239 = vmatpush1.msra.mxu0 0.0
  %240 = vmatprep.subr.mxu0 0.0
  %241 = vmatpush1.msra.mxu0 0.0
  %242 = vmatprep.subr.mxu0 0.0
  %243 = vmatpush1.msra.mxu0 0.0
  %244 = vmatprep.subr.mxu0 0.0
  %245 = vmatpush1.msra.mxu0 0.0
  %246 = vmatprep.subr.mxu0 0.0
  %247 = vmatpush1.msra.mxu0 0.0
  %248 = vmatprep.subr.mxu0 0.0
  %249 = vmatpush1.msra.mxu0 0.0
  %250 = vmatprep.subr.mxu0 0.0
  %251 = vmatpush1.msra.mxu0 0.0
  %252 = vmatprep.subr.mxu0 0.0
  %253 = vmatpush1.msra.mxu0 0.0
  %254 = vmatprep.subr.mxu0 0.0
  %255 = vmatpush1.msra.mxu0 0.0
  %256 = vmatprep.subr.mxu0 0.0
  %257 = vmatpush1.msra.mxu0 0.0
  %258 = vmatprep.subr.mxu0 0.0
  %259 = vmatpush1.msra.mxu0 0.0
  %260 = vmatprep.mubr.f32.mxu0 0.0
  %v261 = vand.u32 %v56, 4294901760
  %262 = vmatmul.mubr.f32.gmra.mrb[0].mxu0 %v261
  %v263 = vpop.f32.mrb[0].mxu0
  %v264 = vadd.f32 %v143, %v263
  %v265 = vpop.f32.mrb[0].mxu0
  %266 = vmatprep.mubr.f32.mxu0 0.0
  %v267 = vand.u32 %v59, 4294901760
  %268 = vmatmul.mubr.f32.gmra.mrb[0].mxu0 %v267
  %v269 = vpop.f32.mrb[0].mxu0
  %v270 = vadd.f32 %v153, %v269
  %v271 = vpop.f32.mrb[0].mxu0
  %272 = vmatprep.mubr.f32.mxu0 0.0
  %v273 = vand.u32 %v62, 4294901760
  %274 = vmatmul.mubr.f32.gmra.mrb[0].mxu0 %v273
  %v275 = vpop.f32.mrb[0].mxu0
  %v276 = vadd.f32 %v163, %v275
  %v277 = vpop.f32.mrb[0].mxu0
  %278 = vmatprep.mubr.f32.mxu0 0.0
  %v279 = vand.u32 %v65, 4294901760
  %280 = vmatmul.mubr.f32.gmra.mrb[0].mxu0 %v279
  %v281 = vpop.f32.mrb[0].mxu0
  %v282 = vadd.f32 %v173, %v281
  %v283 = vpop.f32.mrb[0].mxu0
  %284 = vdwg.mxu0
  %285 = vmatprep.subr.mxu0 0.0
  %v286 = vand.u32 %v14, 4294901760
  %v287 = vsub.f32 %v14, %v286
  %288 = vmatpush1.msra.mxu0 %v287
  %289 = vmatprep.subr.mxu0 0.0
  %v290 = vand.u32 %v15, 4294901760
  %v291 = vsub.f32 %v15, %v290
  %292 = vmatpush1.msra.mxu0 %v291
  %293 = vmatprep.subr.mxu0 0.0
  %v294 = vand.u32 %v16, 4294901760
  %v295 = vsub.f32 %v16, %v294
  %296 = vmatpush1.msra.mxu0 %v295
  %297 = vmatprep.subr.mxu0 0.0
  %v298 = vand.u32 %v17, 4294901760
  %v299 = vsub.f32 %v17, %v298
  %300 = vmatpush1.msra.mxu0 %v299
  %301 = vmatprep.subr.mxu0 0.0
  %302 = vmatpush1.msra.mxu0 0.0
  %303 = vmatprep.subr.mxu0 0.0
  %304 = vmatpush1.msra.mxu0 0.0
  %305 = vmatprep.subr.mxu0 0.0
  %306 = vmatpush1.msra.mxu0 0.0
  %307 = vmatprep.subr.mxu0 0.0
  %308 = vmatpush1.msra.mxu0 0.0
  %309 = vmatprep.subr.mxu0 0.0
  %310 = vmatpush1.msra.mxu0 0.0
  %311 = vmatprep.subr.mxu0 0.0
  %312 = vmatpush1.msra.mxu0 0.0
  %313 = vmatprep.subr.mxu0 0.0
  %314 = vmatpush1.msra.mxu0 0.0
  %315 = vmatprep.subr.mxu0 0.0
  %316 = vmatpush1.msra.mxu0 0.0
  %317 = vmatprep.subr.mxu0 0.0
  %318 = vmatpush1.msra.mxu0 0.0
  %319 = vmatprep.subr.mxu0 0.0
  %320 = vmatpush1.msra.mxu0 0.0
  %321 = vmatprep.subr.mxu0 0.0
  %322 = vmatpush1.msra.mxu0 0.0
  %323 = vmatprep.subr.mxu0 0.0
  %324 = vmatpush1.msra.mxu0 0.0
  %325 = vmatprep.subr.mxu0 0.0
  %326 = vmatpush1.msra.mxu0 0.0
  %327 = vmatprep.subr.mxu0 0.0
  %328 = vmatpush1.msra.mxu0 0.0
  %329 = vmatprep.subr.mxu0 0.0
  %330 = vmatpush1.msra.mxu0 0.0
  %331 = vmatprep.subr.mxu0 0.0
  %332 = vmatpush1.msra.mxu0 0.0
  %333 = vmatprep.subr.mxu0 0.0
  %334 = vmatpush1.msra.mxu0 0.0
  %335 = vmatprep.subr.mxu0 0.0
  %336 = vmatpush1.msra.mxu0 0.0
  %337 = vmatprep.subr.mxu0 0.0
  %338 = vmatpush1.msra.mxu0 0.0
  %339 = vmatprep.subr.mxu0 0.0
  %340 = vmatpush1.msra.mxu0 0.0
  %341 = vmatprep.subr.mxu0 0.0
  %342 = vmatpush1.msra.mxu0 0.0
  %343 = vmatprep.subr.mxu0 0.0
  %344 = vmatpush1.msra.mxu0 0.0
  %345 = vmatprep.subr.mxu0 0.0
  %346 = vmatpush1.msra.mxu0 0.0
  %347 = vmatprep.subr.mxu0 0.0
  %348 = vmatpush1.msra.mxu0 0.0
  %349 = vmatprep.subr.mxu0 0.0
  %350 = vmatpush1.msra.mxu0 0.0
  %351 = vmatprep.subr.mxu0 0.0
  %352 = vmatpush1.msra.mxu0 0.0
  %353 = vmatprep.subr.mxu0 0.0
  %354 = vmatpush1.msra.mxu0 0.0
  %355 = vmatprep.subr.mxu0 0.0
  %356 = vmatpush1.msra.mxu0 0.0
  %357 = vmatprep.mubr.f32.mxu0 0.0
  %v358 = vand.u32 %v56, 4294901760
  %v359 = vsub.f32 %v56, %v358
  %360 = vmatmul.mubr.f32.gmra.mrb[0].mxu0 %v359
  %v361 = vpop.f32.mrb[0].mxu0
  %v362 = vadd.f32 %v264, %v361
  %v363 = vpop.f32.mrb[0].mxu0
  %364 = vmatprep.mubr.f32.mxu0 0.0
  %v365 = vand.u32 %v59, 4294901760
  %v366 = vsub.f32 %v59, %v365
  %367 = vmatmul.mubr.f32.gmra.mrb[0].mxu0 %v366
  %v368 = vpop.f32.mrb[0].mxu0
  %v369 = vadd.f32 %v270, %v368
  %v370 = vpop.f32.mrb[0].mxu0
  %371 = vmatprep.mubr.f32.mxu0 0.0
  %v372 = vand.u32 %v62, 4294901760
  %v373 = vsub.f32 %v62, %v372
  %374 = vmatmul.mubr.f32.gmra.mrb[0].mxu0 %v373
  %v375 = vpop.f32.mrb[0].mxu0
  %v376 = vadd.f32 %v276, %v375
  %v377 = vpop.f32.mrb[0].mxu0
  %378 = vmatprep.mubr.f32.mxu0 0.0
  %v379 = vand.u32 %v65, 4294901760
  %v380 = vsub.f32 %v65, %v379
  %381 = vmatmul.mubr.f32.gmra.mrb[0].mxu0 %v380
  %v382 = vpop.f32.mrb[0].mxu0
  %v383 = vadd.f32 %v282, %v382
  %v384 = vpop.f32.mrb[0].mxu0
  %385 = vdwg.mxu0
  %386 = vmatprep.subr.mxu0 0.0
  %v387 = vand.u32 %v14, 4294901760
  %388 = vmatpush1.msra.mxu0 %v387
  %389 = vmatprep.subr.mxu0 0.0
  %v390 = vand.u32 %v15, 4294901760
  %391 = vmatpush1.msra.mxu0 %v390
  %392 = vmatprep.subr.mxu0 0.0
  %v393 = vand.u32 %v16, 4294901760
  %394 = vmatpush1.msra.mxu0 %v393
  %395 = vmatprep.subr.mxu0 0.0
  %v396 = vand.u32 %v17, 4294901760
  %397 = vmatpush1.msra.mxu0 %v396
  %398 = vmatprep.subr.mxu0 0.0
  %399 = vmatpush1.msra.mxu0 0.0
  %400 = vmatprep.subr.mxu0 0.0
  %401 = vmatpush1.msra.mxu0 0.0
  %402 = vmatprep.subr.mxu0 0.0
  %403 = vmatpush1.msra.mxu0 0.0
  %404 = vmatprep.subr.mxu0 0.0
  %405 = vmatpush1.msra.mxu0 0.0
  %406 = vmatprep.subr.mxu0 0.0
  %407 = vmatpush1.msra.mxu0 0.0
  %408 = vmatprep.subr.mxu0 0.0
  %409 = vmatpush1.msra.mxu0 0.0
  %410 = vmatprep.subr.mxu0 0.0
  %411 = vmatpush1.msra.mxu0 0.0
  %412 = vmatprep.subr.mxu0 0.0
  %413 = vmatpush1.msra.mxu0 0.0
  %414 = vmatprep.subr.mxu0 0.0
  %415 = vmatpush1.msra.mxu0 0.0
  %416 = vmatprep.subr.mxu0 0.0
  %417 = vmatpush1.msra.mxu0 0.0
  %418 = vmatprep.subr.mxu0 0.0
  %419 = vmatpush1.msra.mxu0 0.0
  %420 = vmatprep.subr.mxu0 0.0
  %421 = vmatpush1.msra.mxu0 0.0
  %422 = vmatprep.subr.mxu0 0.0
  %423 = vmatpush1.msra.mxu0 0.0
  %424 = vmatprep.subr.mxu0 0.0
  %425 = vmatpush1.msra.mxu0 0.0
  %426 = vmatprep.subr.mxu0 0.0
  %427 = vmatpush1.msra.mxu0 0.0
  %428 = vmatprep.subr.mxu0 0.0
  %429 = vmatpush1.msra.mxu0 0.0
  %430 = vmatprep.subr.mxu0 0.0
  %431 = vmatpush1.msra.mxu0 0.0
  %432 = vmatprep.subr.mxu0 0.0
  %433 = vmatpush1.msra.mxu0 0.0
  %434 = vmatprep.subr.mxu0 0.0
  %435 = vmatpush1.msra.mxu0 0.0
  %436 = vmatprep.subr.mxu0 0.0
  %437 = vmatpush1.msra.mxu0 0.0
  %438 = vmatprep.subr.mxu0 0.0
  %439 = vmatpush1.msra.mxu0 0.0
  %440 = vmatprep.subr.mxu0 0.0
  %441 = vmatpush1.msra.mxu0 0.0
  %442 = vmatprep.subr.mxu0 0.0
  %443 = vmatpush1.msra.mxu0 0.0
  %444 = vmatprep.subr.mxu0 0.0
  %445 = vmatpush1.msra.mxu0 0.0
  %446 = vmatprep.subr.mxu0 0.0
  %447 = vmatpush1.msra.mxu0 0.0
  %448 = vmatprep.subr.mxu0 0.0
  %449 = vmatpush1.msra.mxu0 0.0
  %450 = vmatprep.subr.mxu0 0.0
  %451 = vmatpush1.msra.mxu0 0.0
  %452 = vmatprep.subr.mxu0 0.0
  %453 = vmatpush1.msra.mxu0 0.0
  %454 = vmatprep.mubr.f32.mxu0 0.0
  %v455 = vand.u32 %v56, 4294901760
  %v456 = vsub.f32 %v56, %v455
  %v457 = vand.u32 %v456, 4294901760
  %458 = vmatmul.mubr.f32.gmra.mrb[0].mxu0 %v457
  %v459 = vpop.f32.mrb[0].mxu0
  %v460 = vadd.f32 %v362, %v459
  %v461 = vpop.f32.mrb[0].mxu0
  %462 = vmatprep.mubr.f32.mxu0 0.0
  %v463 = vand.u32 %v59, 4294901760
  %v464 = vsub.f32 %v59, %v463
  %v465 = vand.u32 %v464, 4294901760
  %466 = vmatmul.mubr.f32.gmra.mrb[0].mxu0 %v465
  %v467 = vpop.f32.mrb[0].mxu0
  %v468 = vadd.f32 %v369, %v467
  %v469 = vpop.f32.mrb[0].mxu0
  %470 = vmatprep.mubr.f32.mxu0 0.0
  %v471 = vand.u32 %v62, 4294901760
  %v472 = vsub.f32 %v62, %v471
  %v473 = vand.u32 %v472, 4294901760
  %474 = vmatmul.mubr.f32.gmra.mrb[0].mxu0 %v473
  %v475 = vpop.f32.mrb[0].mxu0
  %v476 = vadd.f32 %v376, %v475
  %v477 = vpop.f32.mrb[0].mxu0
  %478 = vmatprep.mubr.f32.mxu0 0.0
  %v479 = vand.u32 %v65, 4294901760
  %v480 = vsub.f32 %v65, %v479
  %v481 = vand.u32 %v480, 4294901760
  %482 = vmatmul.mubr.f32.gmra.mrb[0].mxu0 %v481
  %v483 = vpop.f32.mrb[0].mxu0
  %v484 = vadd.f32 %v383, %v483
  %v485 = vpop.f32.mrb[0].mxu0
  %486 = vdwg.mxu0
  %487 = vmatprep.subr.mxu0 0.0
  %v488 = vand.u32 %v14, 4294901760
  %v489 = vsub.f32 %v14, %v488
  %v490 = vand.u32 %v489, 4294901760
  %491 = vmatpush1.msra.mxu0 %v490
  %492 = vmatprep.subr.mxu0 0.0
  %v493 = vand.u32 %v15, 4294901760
  %v494 = vsub.f32 %v15, %v493
  %v495 = vand.u32 %v494, 4294901760
  %496 = vmatpush1.msra.mxu0 %v495
  %497 = vmatprep.subr.mxu0 0.0
  %v498 = vand.u32 %v16, 4294901760
  %v499 = vsub.f32 %v16, %v498
  %v500 = vand.u32 %v499, 4294901760
  %501 = vmatpush1.msra.mxu0 %v500
  %502 = vmatprep.subr.mxu0 0.0
  %v503 = vand.u32 %v17, 4294901760
  %v504 = vsub.f32 %v17, %v503
  %v505 = vand.u32 %v504, 4294901760
  %506 = vmatpush1.msra.mxu0 %v505
  %507 = vmatprep.subr.mxu0 0.0
  %508 = vmatpush1.msra.mxu0 0.0
  %509 = vmatprep.subr.mxu0 0.0
  %510 = vmatpush1.msra.mxu0 0.0
  %511 = vmatprep.subr.mxu0 0.0
  %512 = vmatpush1.msra.mxu0 0.0
  %513 = vmatprep.subr.mxu0 0.0
  %514 = vmatpush1.msra.mxu0 0.0
  %515 = vmatprep.subr.mxu0 0.0
  %516 = vmatpush1.msra.mxu0 0.0
  %517 = vmatprep.subr.mxu0 0.0
  %518 = vmatpush1.msra.mxu0 0.0
  %519 = vmatprep.subr.mxu0 0.0
  %520 = vmatpush1.msra.mxu0 0.0
  %521 = vmatprep.subr.mxu0 0.0
  %522 = vmatpush1.msra.mxu0 0.0
  %523 = vmatprep.subr.mxu0 0.0
  %524 = vmatpush1.msra.mxu0 0.0
  %525 = vmatprep.subr.mxu0 0.0
  %526 = vmatpush1.msra.mxu0 0.0
  %527 = vmatprep.subr.mxu0 0.0
  %528 = vmatpush1.msra.mxu0 0.0
  %529 = vmatprep.subr.mxu0 0.0
  %530 = vmatpush1.msra.mxu0 0.0
  %531 = vmatprep.subr.mxu0 0.0
  %532 = vmatpush1.msra.mxu0 0.0
  %533 = vmatprep.subr.mxu0 0.0
  %534 = vmatpush1.msra.mxu0 0.0
  %535 = vmatprep.subr.mxu0 0.0
  %536 = vmatpush1.msra.mxu0 0.0
  %537 = vmatprep.subr.mxu0 0.0
  %538 = vmatpush1.msra.mxu0 0.0
  %539 = vmatprep.subr.mxu0 0.0
  %540 = vmatpush1.msra.mxu0 0.0
  %541 = vmatprep.subr.mxu0 0.0
  %542 = vmatpush1.msra.mxu0 0.0
  %543 = vmatprep.subr.mxu0 0.0
  %544 = vmatpush1.msra.mxu0 0.0
  %545 = vmatprep.subr.mxu0 0.0
  %546 = vmatpush1.msra.mxu0 0.0
  %547 = vmatprep.subr.mxu0 0.0
  %548 = vmatpush1.msra.mxu0 0.0
  %549 = vmatprep.subr.mxu0 0.0
  %550 = vmatpush1.msra.mxu0 0.0
  %551 = vmatprep.subr.mxu0 0.0
  %552 = vmatpush1.msra.mxu0 0.0
  %553 = vmatprep.subr.mxu0 0.0
  %554 = vmatpush1.msra.mxu0 0.0
  %555 = vmatprep.subr.mxu0 0.0
  %556 = vmatpush1.msra.mxu0 0.0
  %557 = vmatprep.subr.mxu0 0.0
  %558 = vmatpush1.msra.mxu0 0.0
  %559 = vmatprep.subr.mxu0 0.0
  %560 = vmatpush1.msra.mxu0 0.0
  %561 = vmatprep.subr.mxu0 0.0
  %562 = vmatpush1.msra.mxu0 0.0
  %563 = vmatprep.mubr.f32.mxu0 0.0
  %v564 = vand.u32 %v56, 4294901760
  %565 = vmatmul.mubr.f32.gmra.mrb[0].mxu0 %v564
  %v566 = vpop.f32.mrb[0].mxu0
  %v567 = vadd.f32 %v460, %v566
  %v568 = vpop.f32.mrb[0].mxu0
  %569 = vmatprep.mubr.f32.mxu0 0.0
  %v570 = vand.u32 %v59, 4294901760
  %571 = vmatmul.mubr.f32.gmra.mrb[0].mxu0 %v570
  %v572 = vpop.f32.mrb[0].mxu0
  %v573 = vadd.f32 %v468, %v572
  %v574 = vpop.f32.mrb[0].mxu0
  %575 = vmatprep.mubr.f32.mxu0 0.0
  %v576 = vand.u32 %v62, 4294901760
  %577 = vmatmul.mubr.f32.gmra.mrb[0].mxu0 %v576
  %v578 = vpop.f32.mrb[0].mxu0
  %v579 = vadd.f32 %v476, %v578
  %v580 = vpop.f32.mrb[0].mxu0
  %581 = vmatprep.mubr.f32.mxu0 0.0
  %v582 = vand.u32 %v65, 4294901760
  %583 = vmatmul.mubr.f32.gmra.mrb[0].mxu0 %v582
  %v584 = vpop.f32.mrb[0].mxu0
  %v585 = vadd.f32 %v484, %v584
  %v586 = vpop.f32.mrb[0].mxu0
  %587 = vdwg.mxu0
  %588 = vmatprep.subr.mxu0 0.0
  %v589 = vand.u32 %v14, 4294901760
  %590 = vmatpush1.msra.mxu0 %v589
  %591 = vmatprep.subr.mxu0 0.0
  %v592 = vand.u32 %v15, 4294901760
  %593 = vmatpush1.msra.mxu0 %v592
  %594 = vmatprep.subr.mxu0 0.0
  %v595 = vand.u32 %v16, 4294901760
  %596 = vmatpush1.msra.mxu0 %v595
  %597 = vmatprep.subr.mxu0 0.0
  %v598 = vand.u32 %v17, 4294901760
  %599 = vmatpush1.msra.mxu0 %v598
  %600 = vmatprep.subr.mxu0 0.0
  %601 = vmatpush1.msra.mxu0 0.0
  %602 = vmatprep.subr.mxu0 0.0
  %603 = vmatpush1.msra.mxu0 0.0
  %604 = vmatprep.subr.mxu0 0.0
  %605 = vmatpush1.msra.mxu0 0.0
  %606 = vmatprep.subr.mxu0 0.0
  %607 = vmatpush1.msra.mxu0 0.0
  %608 = vmatprep.subr.mxu0 0.0
  %609 = vmatpush1.msra.mxu0 0.0
  %610 = vmatprep.subr.mxu0 0.0
  %611 = vmatpush1.msra.mxu0 0.0
  %612 = vmatprep.subr.mxu0 0.0
  %613 = vmatpush1.msra.mxu0 0.0
  %614 = vmatprep.subr.mxu0 0.0
  %615 = vmatpush1.msra.mxu0 0.0
  %616 = vmatprep.subr.mxu0 0.0
  %617 = vmatpush1.msra.mxu0 0.0
  %618 = vmatprep.subr.mxu0 0.0
  %619 = vmatpush1.msra.mxu0 0.0
  %620 = vmatprep.subr.mxu0 0.0
  %621 = vmatpush1.msra.mxu0 0.0
  %622 = vmatprep.subr.mxu0 0.0
  %623 = vmatpush1.msra.mxu0 0.0
  %624 = vmatprep.subr.mxu0 0.0
  %625 = vmatpush1.msra.mxu0 0.0
  %626 = vmatprep.subr.mxu0 0.0
  %627 = vmatpush1.msra.mxu0 0.0
  %628 = vmatprep.subr.mxu0 0.0
  %629 = vmatpush1.msra.mxu0 0.0
  %630 = vmatprep.subr.mxu0 0.0
  %631 = vmatpush1.msra.mxu0 0.0
  %632 = vmatprep.subr.mxu0 0.0
  %633 = vmatpush1.msra.mxu0 0.0
  %634 = vmatprep.subr.mxu0 0.0
  %635 = vmatpush1.msra.mxu0 0.0
  %636 = vmatprep.subr.mxu0 0.0
  %637 = vmatpush1.msra.mxu0 0.0
  %638 = vmatprep.subr.mxu0 0.0
  %639 = vmatpush1.msra.mxu0 0.0
  %640 = vmatprep.subr.mxu0 0.0
  %641 = vmatpush1.msra.mxu0 0.0
  %642 = vmatprep.subr.mxu0 0.0
  %643 = vmatpush1.msra.mxu0 0.0
  %644 = vmatprep.subr.mxu0 0.0
  %645 = vmatpush1.msra.mxu0 0.0
  %646 = vmatprep.subr.mxu0 0.0
  %647 = vmatpush1.msra.mxu0 0.0
  %648 = vmatprep.subr.mxu0 0.0
  %649 = vmatpush1.msra.mxu0 0.0
  %650 = vmatprep.subr.mxu0 0.0
  %651 = vmatpush1.msra.mxu0 0.0
  %652 = vmatprep.subr.mxu0 0.0
  %653 = vmatpush1.msra.mxu0 0.0
  %654 = vmatprep.subr.mxu0 0.0
  %655 = vmatpush1.msra.mxu0 0.0
  %656 = vmatprep.mubr.f32.mxu0 0.0
  %v657 = vand.u32 %v56, 4294901760
  %658 = vmatmul.mubr.f32.gmra.mrb[0].mxu0 %v657
  %v659 = vpop.f32.mrb[0].mxu0
  %v660 = vadd.f32 %v567, %v659
  %v661 = vpop.f32.mrb[0].mxu0
  %662 = vmatprep.mubr.f32.mxu0 0.0
  %v663 = vand.u32 %v59, 4294901760
  %664 = vmatmul.mubr.f32.gmra.mrb[0].mxu0 %v663
  %v665 = vpop.f32.mrb[0].mxu0
  %v666 = vadd.f32 %v573, %v665
  %v667 = vpop.f32.mrb[0].mxu0
  %668 = vmatprep.mubr.f32.mxu0 0.0
  %v669 = vand.u32 %v62, 4294901760
  %670 = vmatmul.mubr.f32.gmra.mrb[0].mxu0 %v669
  %v671 = vpop.f32.mrb[0].mxu0
  %v672 = vadd.f32 %v579, %v671
  %v673 = vpop.f32.mrb[0].mxu0
  %674 = vmatprep.mubr.f32.mxu0 0.0
  %v675 = vand.u32 %v65, 4294901760
  %676 = vmatmul.mubr.f32.gmra.mrb[0].mxu0 %v675
  %v677 = vpop.f32.mrb[0].mxu0
  %v678 = vadd.f32 %v585, %v677
  %v679 = vpop.f32.mrb[0].mxu0
  %680 = vdwg.mxu0
  %v681 = vmul.f32 %v660, %v22
  %v682 = vmul.f32 %v666, %v23
  %v683 = vmul.f32 %v672, %v24
  %v684 = vmul.f32 %v678, %v25
  %v685 = vmul.f32 %v660, %v26
  %v686 = vmul.f32 %v666, %v27
  %v687 = vmul.f32 %v672, %v28
  %v688 = vmul.f32 %v678, %v29
  %v689 = vmul.f32 %v660, %v30
  %v690 = vmul.f32 %v666, %v31
  %v691 = vmul.f32 %v672, %v32
  %v692 = vmul.f32 %v678, %v33
  %v693 = vmul.f32 %v660, %v34
  %v694 = vmul.f32 %v666, %v35
  %v695 = vmul.f32 %v672, %v36
  %v696 = vmul.f32 %v678, %v37
  %v697 = vmul.f32 %v660, %v38
  %v698 = vmul.f32 %v666, %v39
  %v699 = vmul.f32 %v672, %v40
  %v700 = vmul.f32 %v678, %v41
  %v701 = vmul.f32 %v660, %v42
  %v702 = vmul.f32 %v666, %v43
  %v703 = vmul.f32 %v672, %v44
  %v704 = vmul.f32 %v678, %v45
  %v705 = vmul.f32 %v660, %v46
  %v706 = vmul.f32 %v666, %v47
  %v707 = vmul.f32 %v672, %v48
  %v708 = vmul.f32 %v678, %v49
  %v709 = vmul.f32 %v660, %v50
  %v710 = vmul.f32 %v666, %v51
  %v711 = vmul.f32 %v672, %v52
  %v712 = vmul.f32 %v678, %v53
  %vm713 = vcmask 31744
  %v714 = vsel %vm713, %v681, 0.0
  %v715 = vsel %vm713, %v682, 0.0
  %v716 = vadd.f32 %v714, %v715
  %v717 = vsel %vm713, %v683, 0.0
  %v718 = vadd.f32 %v716, %v717
  %v719 = vsel %vm713, %v684, 0.0
  %v720 = vadd.f32 %v718, %v719
  %v721 = vrot.slane %v720, 4
  %v722 = vadd.f32 %v720, %v721
  %v723 = vrot.slane %v722, 2
  %v724 = vadd.f32 %v722, %v723
  %v725 = vrot.slane %v724, 1
  %v726 = vadd.f32 %v724, %v725
  %v727 = vsel %vm713, %v685, 0.0
  %v728 = vsel %vm713, %v686, 0.0
  %v729 = vadd.f32 %v727, %v728
  %v730 = vsel %vm713, %v687, 0.0
  %v731 = vadd.f32 %v729, %v730
  %v732 = vsel %vm713, %v688, 0.0
  %v733 = vadd.f32 %v731, %v732
  %v734 = vrot.slane %v733, 4
  %v735 = vadd.f32 %v733, %v734
  %v736 = vrot.slane %v735, 2
  %v737 = vadd.f32 %v735, %v736
  %v738 = vrot.slane %v737, 1
  %v739 = vadd.f32 %v737, %v738
  %v740 = vsel %vm713, %v689, 0.0
  %v741 = vsel %vm713, %v690, 0.0
  %v742 = vadd.f32 %v740, %v741
  %v743 = vsel %vm713, %v691, 0.0
  %v744 = vadd.f32 %v742, %v743
  %v745 = vsel %vm713, %v692, 0.0
  %v746 = vadd.f32 %v744, %v745
  %v747 = vrot.slane %v746, 4
  %v748 = vadd.f32 %v746, %v747
  %v749 = vrot.slane %v748, 2
  %v750 = vadd.f32 %v748, %v749
  %v751 = vrot.slane %v750, 1
  %v752 = vadd.f32 %v750, %v751
  %v753 = vsel %vm713, %v693, 0.0
  %v754 = vsel %vm713, %v694, 0.0
  %v755 = vadd.f32 %v753, %v754
  %v756 = vsel %vm713, %v695, 0.0
  %v757 = vadd.f32 %v755, %v756
  %v758 = vsel %vm713, %v696, 0.0
  %v759 = vadd.f32 %v757, %v758
  %v760 = vrot.slane %v759, 4
  %v761 = vadd.f32 %v759, %v760
  %v762 = vrot.slane %v761, 2
  %v763 = vadd.f32 %v761, %v762
  %v764 = vrot.slane %v763, 1
  %v765 = vadd.f32 %v763, %v764
  %v766 = vsel %vm713, %v697, 0.0
  %v767 = vsel %vm713, %v698, 0.0
  %v768 = vadd.f32 %v766, %v767
  %v769 = vsel %vm713, %v699, 0.0
  %v770 = vadd.f32 %v768, %v769
  %v771 = vsel %vm713, %v700, 0.0
  %v772 = vadd.f32 %v770, %v771
  %v773 = vrot.slane %v772, 4
  %v774 = vadd.f32 %v772, %v773
  %v775 = vrot.slane %v774, 2
  %v776 = vadd.f32 %v774, %v775
  %v777 = vrot.slane %v776, 1
  %v778 = vadd.f32 %v776, %v777
  %v779 = vsel %vm713, %v701, 0.0
  %v780 = vsel %vm713, %v702, 0.0
  %v781 = vadd.f32 %v779, %v780
  %v782 = vsel %vm713, %v703, 0.0
  %v783 = vadd.f32 %v781, %v782
  %v784 = vsel %vm713, %v704, 0.0
  %v785 = vadd.f32 %v783, %v784
  %v786 = vrot.slane %v785, 4
  %v787 = vadd.f32 %v785, %v786
  %v788 = vrot.slane %v787, 2
  %v789 = vadd.f32 %v787, %v788
  %v790 = vrot.slane %v789, 1
  %v791 = vadd.f32 %v789, %v790
  %v792 = vsel %vm713, %v705, 0.0
  %v793 = vsel %vm713, %v706, 0.0
  %v794 = vadd.f32 %v792, %v793
  %v795 = vsel %vm713, %v707, 0.0
  %v796 = vadd.f32 %v794, %v795
  %v797 = vsel %vm713, %v708, 0.0
  %v798 = vadd.f32 %v796, %v797
  %v799 = vrot.slane %v798, 4
  %v800 = vadd.f32 %v798, %v799
  %v801 = vrot.slane %v800, 2
  %v802 = vadd.f32 %v800, %v801
  %v803 = vrot.slane %v802, 1
  %v804 = vadd.f32 %v802, %v803
  %v805 = vsel %vm713, %v709, 0.0
  %v806 = vsel %vm713, %v710, 0.0
  %v807 = vadd.f32 %v805, %v806
  %v808 = vsel %vm713, %v711, 0.0
  %v809 = vadd.f32 %v807, %v808
  %v810 = vsel %vm713, %v712, 0.0
  %v811 = vadd.f32 %v809, %v810
  %v812 = vrot.slane %v811, 4
  %v813 = vadd.f32 %v811, %v812
  %v814 = vrot.slane %v813, 2
  %v815 = vadd.f32 %v813, %v814
  %v816 = vrot.slane %v815, 1
  %v817 = vadd.f32 %v815, %v816
  %v818 = vsel %vm713, %v726, -inf
  %v819 = vsel %vm713, %v739, -inf
  %v820 = vsel %vm713, %v752, -inf
  %v821 = vsel %vm713, %v765, -inf
  %v822 = vsel %vm713, %v778, -inf
  %v823 = vmax.f32 %v818, %v822
  %v824 = vsel %vm713, %v791, -inf
  %v825 = vmax.f32 %v819, %v824
  %v826 = vsel %vm713, %v804, -inf
  %v827 = vmax.f32 %v820, %v826
  %v828 = vsel %vm713, %v817, -inf
  %v829 = vmax.f32 %v821, %v828
  %v830 = vmax.f32 %v823, %v825
  %v831 = vmax.f32 %v827, %v829
  %v832 = vmax.f32 %v830, %v831
  %v833 = vmax.f32 %v832, 0.0
  %v834 = vsub.f32 %v726, %v833
  %v835 = vsub.f32 %v739, %v833
  %v836 = vsub.f32 %v752, %v833
  %v837 = vsub.f32 %v765, %v833
  %v838 = vsub.f32 %v778, %v833
  %v839 = vsub.f32 %v791, %v833
  %v840 = vsub.f32 %v804, %v833
  %v841 = vsub.f32 %v817, %v833
  %v842 = vmul.f32 %v834, 1.442695
  %v843 = vpow.pop %v842
  %v844 = vmul.f32 %v835, 1.442695
  %v845 = vpow.pop %v844
  %v846 = vmul.f32 %v836, 1.442695
  %v847 = vpow.pop %v846
  %v848 = vmul.f32 %v837, 1.442695
  %v849 = vpow.pop %v848
  %v850 = vmul.f32 %v838, 1.442695
  %v851 = vpow.pop %v850
  %v852 = vmul.f32 %v839, 1.442695
  %v853 = vpow.pop %v852
  %v854 = vmul.f32 %v840, 1.442695
  %v855 = vpow.pop %v854
  %v856 = vmul.f32 %v841, 1.442695
  %v857 = vpow.pop %v856
  %v866 = vrot.slane %v845, 7
  %vm867 = vcmask 1041409
  %v868 = vsel %vm867, %v866, %v843
  %v869 = vrot.slane %v847, 6
  %vm870 = vcmask 1042434
  %v871 = vsel %vm870, %v869, %v868
  %v872 = vrot.slane %v849, 5
  %vm873 = vcmask 1043459
  %v874 = vsel %vm873, %v872, %v871
  %v875 = vrot.slane %v851, 4
  %vm876 = vcmask 1044484
  %v877 = vsel %vm876, %v875, %v874
  %v878 = vrot.slane %v853, 3
  %vm879 = vcmask 1045509
  %v880 = vsel %vm879, %v878, %v877
  %v881 = vrot.slane %v855, 2
  %vm882 = vcmask 1046534
  %v883 = vsel %vm882, %v881, %v880
  %v884 = vrot.slane %v857, 1
  %vm885 = vcmask 1047559
  %v886 = vsel %vm885, %v884, %v883
  %v888 = vsel %vm713, %v886, 0.0
  %v889 = vrot.slane %v888, 4
  %v890 = vadd.f32 %v888, %v889
  %v891 = vrot.slane %v890, 2
  %v892 = vadd.f32 %v890, %v891
  %v893 = vrot.slane %v892, 1
  %v894 = vadd.f32 %v892, %v893
  %v895 = vsub.f32 0.0, %v833
  %v896 = vmul.f32 %v895, 1.442695
  %v897 = vpow.pop %v896
  %v898 = vadd.f32 %v894, %v897
  %v899 = vlaneseq
  %v900 = vshrl.u32 %v899, 7
  %v901 = vsub.s32 0, %v900
  %v902 = vrot.slane %v898, %v901
  %v903 = vrcp.pop %v902
  %v904 = vmul.f32 %v843, %v903
  %v905 = vmul.f32 %v845, %v903
  %v906 = vmul.f32 %v847, %v903
  %v907 = vmul.f32 %v849, %v903
  %v908 = vmul.f32 %v851, %v903
  %v909 = vmul.f32 %v853, %v903
  %v910 = vmul.f32 %v855, %v903
  %v911 = vmul.f32 %v857, %v903
  %v912 = vlaneseq
  %v913 = vshrl.u32 %v912, 7
  %v914 = vsub.s32 0, %v913
  %v915 = vrot.slane %v904, %v914
  %v916 = vlaneseq
  %v917 = vshrl.u32 %v916, 7
  %v918 = vsub.s32 0, %v917
  %v919 = vrot.slane %v905, %v918
  %v920 = vlaneseq
  %v921 = vshrl.u32 %v920, 7
  %v922 = vsub.s32 0, %v921
  %v923 = vrot.slane %v906, %v922
  %v924 = vlaneseq
  %v925 = vshrl.u32 %v924, 7
  %v926 = vsub.s32 0, %v925
  %v927 = vrot.slane %v907, %v926
  %v928 = vlaneseq
  %v929 = vshrl.u32 %v928, 7
  %v930 = vsub.s32 0, %v929
  %v931 = vrot.slane %v908, %v930
  %v932 = vlaneseq
  %v933 = vshrl.u32 %v932, 7
  %v934 = vsub.s32 0, %v933
  %v935 = vrot.slane %v909, %v934
  %v936 = vlaneseq
  %v937 = vshrl.u32 %v936, 7
  %v938 = vsub.s32 0, %v937
  %v939 = vrot.slane %v910, %v938
  %v940 = vlaneseq
  %v941 = vshrl.u32 %v940, 7
  %v942 = vsub.s32 0, %v941
  %v943 = vrot.slane %v911, %v942
  %v944 = vmul.f32 %v915, %v22
  %v945 = vmul.f32 %v915, %v23
  %v946 = vmul.f32 %v915, %v24
  %v947 = vmul.f32 %v915, %v25
  %v948 = vmul.f32 %v919, %v26
  %v949 = vmul.f32 %v919, %v27
  %v950 = vmul.f32 %v919, %v28
  %v951 = vmul.f32 %v919, %v29
  %v952 = vmul.f32 %v923, %v30
  %v953 = vmul.f32 %v923, %v31
  %v954 = vmul.f32 %v923, %v32
  %v955 = vmul.f32 %v923, %v33
  %v956 = vmul.f32 %v927, %v34
  %v957 = vmul.f32 %v927, %v35
  %v958 = vmul.f32 %v927, %v36
  %v959 = vmul.f32 %v927, %v37
  %v960 = vmul.f32 %v931, %v38
  %v961 = vmul.f32 %v931, %v39
  %v962 = vmul.f32 %v931, %v40
  %v963 = vmul.f32 %v931, %v41
  %v964 = vmul.f32 %v935, %v42
  %v965 = vmul.f32 %v935, %v43
  %v966 = vmul.f32 %v935, %v44
  %v967 = vmul.f32 %v935, %v45
  %v968 = vmul.f32 %v939, %v46
  %v969 = vmul.f32 %v939, %v47
  %v970 = vmul.f32 %v939, %v48
  %v971 = vmul.f32 %v939, %v49
  %v972 = vmul.f32 %v943, %v50
  %v973 = vmul.f32 %v943, %v51
  %v974 = vmul.f32 %v943, %v52
  %v975 = vmul.f32 %v943, %v53
  %v976 = vsel %vm713, %v944, 0.0
  %v977 = vsel %vm713, %v948, 0.0
  %v978 = vadd.f32 %v976, %v977
  %v979 = vsel %vm713, %v952, 0.0
  %v980 = vadd.f32 %v978, %v979
  %v981 = vsel %vm713, %v956, 0.0
  %v982 = vadd.f32 %v980, %v981
  %v983 = vsel %vm713, %v960, 0.0
  %v984 = vadd.f32 %v982, %v983
  %v985 = vsel %vm713, %v964, 0.0
  %v986 = vadd.f32 %v984, %v985
  %v987 = vsel %vm713, %v968, 0.0
  %v988 = vadd.f32 %v986, %v987
  %v989 = vsel %vm713, %v972, 0.0
  %v990 = vadd.f32 %v988, %v989
  %v991 = vsel %vm713, %v945, 0.0
  %v992 = vsel %vm713, %v949, 0.0
  %v993 = vadd.f32 %v991, %v992
  %v994 = vsel %vm713, %v953, 0.0
  %v995 = vadd.f32 %v993, %v994
  %v996 = vsel %vm713, %v957, 0.0
  %v997 = vadd.f32 %v995, %v996
  %v998 = vsel %vm713, %v961, 0.0
  %v999 = vadd.f32 %v997, %v998
  %v1000 = vsel %vm713, %v965, 0.0
  %v1001 = vadd.f32 %v999, %v1000
  %v1002 = vsel %vm713, %v969, 0.0
  %v1003 = vadd.f32 %v1001, %v1002
  %v1004 = vsel %vm713, %v973, 0.0
  %v1005 = vadd.f32 %v1003, %v1004
  %v1006 = vsel %vm713, %v946, 0.0
  %v1007 = vsel %vm713, %v950, 0.0
  %v1008 = vadd.f32 %v1006, %v1007
  %v1009 = vsel %vm713, %v954, 0.0
  %v1010 = vadd.f32 %v1008, %v1009
  %v1011 = vsel %vm713, %v958, 0.0
  %v1012 = vadd.f32 %v1010, %v1011
  %v1013 = vsel %vm713, %v962, 0.0
  %v1014 = vadd.f32 %v1012, %v1013
  %v1015 = vsel %vm713, %v966, 0.0
  %v1016 = vadd.f32 %v1014, %v1015
  %v1017 = vsel %vm713, %v970, 0.0
  %v1018 = vadd.f32 %v1016, %v1017
  %v1019 = vsel %vm713, %v974, 0.0
  %v1020 = vadd.f32 %v1018, %v1019
  %v1021 = vsel %vm713, %v947, 0.0
  %v1022 = vsel %vm713, %v951, 0.0
  %v1023 = vadd.f32 %v1021, %v1022
  %v1024 = vsel %vm713, %v955, 0.0
  %v1025 = vadd.f32 %v1023, %v1024
  %v1026 = vsel %vm713, %v959, 0.0
  %v1027 = vadd.f32 %v1025, %v1026
  %v1028 = vsel %vm713, %v963, 0.0
  %v1029 = vadd.f32 %v1027, %v1028
  %v1030 = vsel %vm713, %v967, 0.0
  %v1031 = vadd.f32 %v1029, %v1030
  %v1032 = vsel %vm713, %v971, 0.0
  %v1033 = vadd.f32 %v1031, %v1032
  %v1034 = vsel %vm713, %v975, 0.0
  %v1035 = vadd.f32 %v1033, %v1034
  %1036 = vst.msk [vmem:[%s3] sm:$0xff] %vm713, %v990
  %1037 = vst.msk [vmem:[%s3 + $0x8] sm:$0xff] %vm713, %v1005
  %1038 = vst.msk [vmem:[%s3 + $0x10] sm:$0xff] %vm713, %v1020
  %1039 = vst.msk [vmem:[%s3 + $0x18] sm:$0xff] %vm713, %v1035
  // Predicated region
  $region14: #{tpu_custom_call.1} parent=0 // pred_check
    _
  $region15: #{tpu_custom_call.1} parent=0 // pred_check_branch
    %1041 = sbr.rel (0) target = $region17
  $region16: #{tpu_custom_call.1} parent=0 // pred_region
    _
  $region17: #{tpu_custom_call.1} parent=0 // pred_fallthru
    _
  // Predicated region
  $region18: #{tpu_custom_call.1} parent=0 // pred_check
    _
  $region19: #{tpu_custom_call.1} parent=0 // pred_check_branch
    %1043 = sbr.rel (0) target = $region21
  $region20: #{tpu_custom_call.1} parent=0 // pred_region
    _
  $region21: #{tpu_custom_call.1} parent=0 // pred_fallthru
    _

</llo_original>
